<compile_context>
chip_gen: v7x
topology: tpu7x:2x2x1
jax: 0.10.0
libtpu: 0.0.40
codegen_flags: <defaults>
</compile_context>

<pallas_src>
import functools

import jax
import jax.numpy as jnp
from jax import lax
from jax.experimental import pallas as pl
from jax.experimental.pallas import tpu as pltpu

N_STEPS = 8          # fixed-step Euler steps over t in [0, 1]


def _round_up(x, m):
    return ((x + m - 1) // m) * m


def _pad2d(a, rows, cols):
    pr, pc = rows - a.shape[0], cols - a.shape[1]
    if pr == 0 and pc == 0:
        return a
    return jnp.pad(a, ((0, pr), (0, pc)))


@functools.lru_cache(maxsize=1)
def _tensorcores_per_chip():
    """Best-effort detection of TensorCores per chip (v7x has 2)."""
    try:
        kind = jax.devices()[0].device_kind.lower()
        if "v7" in kind:
            return 2
    except Exception:
        pass
    return 1


def odenet_linear_kernel(x_ref, w1_ref, b1_ref, w2s_ref, b2s_ref,
                         wc_ref, bc_ref, out_ref):
    """One batch-tile: Euler-integrate the linear residual ODE, then classify."""
    tb = x_ref.shape[0]
    x = x_ref[...]                                   # (TB, Dp) f32 state
    w1 = w1_ref[...]                                  # (Dp, Hp) bf16
    w2s = w2s_ref[...]                                # (Hp, Dp) bf16, dt folded in

    # Hoist the loop-reused bias broadcasts out of the unrolled Euler loop
    # (JAX does not CSE broadcast_in_dim; unroll=True would otherwise emit
    # 2 broadcasts per step).
    b1b = jnp.broadcast_to(b1_ref[...], (tb, w1.shape[1]))     # f32 (TB, Hp)
    b2sb = jnp.broadcast_to(b2s_ref[...], (tb, w2s.shape[1]))  # f32 (TB, Dp)

    def f(state):
        # bf16 operands on the MXU, f32 accumulation.
        h = jnp.dot(state.astype(jnp.bfloat16), w1,
                    preferred_element_type=jnp.float32) + b1b
        h = jnp.maximum(h, 0.0)                       # act = ReLU
        return jnp.dot(h.astype(jnp.bfloat16), w2s,
                       preferred_element_type=jnp.float32) + b2sb

    def euler_step(_, state):
        return state + f(state)                       # dt already folded into w2s/b2s

    # TODO(synk): for further gains, drive the MXU explicitly
    # (pltpu.matmul_push_rhs / matmul_acc_lhs / matmul_pop) to keep W1/W2s
    # resident across all 8 Euler steps instead of re-streaming them per dot.
    x = lax.fori_loop(0, N_STEPS, euler_step, x, unroll=True)

    # Flatten is identity for (B, D); classifier logits (lane-dense Cp).
    # bcb is consumed once -> broadcast here, not before the loop.
    wc = wc_ref[...]                                  # (Dp, Cp) bf16
    bcb = jnp.broadcast_to(bc_ref[...], (tb, wc.shape[1]))     # f32 (TB, Cp)
    logits = jnp.dot(x.astype(jnp.bfloat16), wc,
                     preferred_element_type=jnp.float32) + bcb
    out_ref[...] = logits.astype(out_ref.dtype)


@functools.partial(jax.jit, static_argnames=("num_classes",))
def odenet_model_linear(x, w1, b1, w2, b2, wc, bc, *, num_classes):
    B, D = x.shape
    H = w1.shape[1]

    # Lane-dense padding of feature, hidden and class dims (exact: zero pads
    # are inert — see header comment).
    Dp = _round_up(D, 128)
    Hp = _round_up(H, 128)
    Cp = _round_up(num_classes, 128)

    # Batch tiling (see header): n_tiles first, then tile size, then b_pad,
    # so padding waste is capped at <= 7 rows per tile.
    cores = _tensorcores_per_chip()
    max_tile = 256 if cores >= 2 else 512            # v7x: smaller tiles, 2 TCs

    b_pad = _round_up(B, 8)
    min_tiles = 2 if (cores >= 2 and b_pad >= 16) else 1   # keep both v7x TCs busy
    n_tiles = max(pl.cdiv(b_pad, max_tile), min_tiles)
    tile_b = _round_up(pl.cdiv(b_pad, n_tiles), 8)
    b_pad = n_tiles * tile_b
    grid = (n_tiles,)

    dt = jnp.float32(1.0 / N_STEPS)

    xp = _pad2d(x.astype(jnp.float32), b_pad, Dp)
    w1p = _pad2d(w1, Dp, Hp).astype(jnp.bfloat16)
    b1p = _pad2d(b1.reshape(1, -1), 1, Hp).astype(jnp.float32)
    w2sp = _pad2d(w2 * dt, Hp, Dp).astype(jnp.bfloat16)          # dt folded in
    b2sp = _pad2d((b2.reshape(1, -1) * dt).astype(jnp.float32), 1, Dp)
    wcp = _pad2d(wc, Dp, Cp).astype(jnp.bfloat16)
    bcp = _pad2d(bc.reshape(1, -1), 1, Cp).astype(jnp.float32)

    rep = lambda shape: pl.BlockSpec(shape, lambda i: (0, 0))
    # TODO(synk): for very large D/H on v7x (64 MiB VMEM), single-buffer these
    # grid-invariant weight specs (pipeline_mode=pl.Buffered(1)) and raise
    # vmem_limit_bytes; at typical MLP shapes resident VMEM is tiny, so the
    # default double-buffered specs are fine.
    # TODO(synk): once validated on v7x, use pltpu.CORE_PARALLEL on the batch
    # axis; plain "parallel" already allows megacore sharding of the grid.
    # TODO(synk): for HBM-bound large-B runs, emit bf16 logits (or skip the
    # final slice) to halve output writeback bytes.

    out = pl.pallas_call(
        odenet_linear_kernel,
        out_shape=jax.ShapeDtypeStruct((b_pad, Cp), jnp.float32),
        grid_spec=pltpu.PrefetchScalarGridSpec(
            num_scalar_prefetch=0,
            grid=grid,
            in_specs=[
                pl.BlockSpec((tile_b, Dp), lambda i: (i, 0)),   # x batch tile
                rep((Dp, Hp)),                                  # W1
                rep((1, Hp)),                                   # b1
                rep((Hp, Dp)),                                  # W2 * dt
                rep((1, Dp)),                                   # b2 * dt
                rep((Dp, Cp)),                                  # Wc (padded)
                rep((1, Cp)),                                   # bc (padded)
            ],
            out_specs=pl.BlockSpec((tile_b, Cp), lambda i: (i, 0)),
        ),
        compiler_params=pltpu.CompilerParams(
            dimension_semantics=("parallel",)),
    )(xp, w1p, b1p, w2sp, b2sp, wcp, bcp)

    return out[:B, :num_classes]


def reference_forward_f32(x, w1, b1, w2, b2, wc, bc):
    """Pure f32 reference of the same forward pass."""
    dt = 1.0 / N_STEPS

    def f(s):
        return jnp.maximum(s @ w1 + b1, 0.0) @ w2 + b2

    for _ in range(N_STEPS):
        x = x + dt * f(x)
    return x @ wc + bc


def reference_forward_bf16(x, w1, b1, w2, b2, wc, bc):
    """Mirrors the kernel's mixed-precision math exactly
    (bf16 MXU operands, f32 accumulation, dt folded into W2/b2)."""
    dt = jnp.float32(1.0 / N_STEPS)
    w1b = w1.astype(jnp.bfloat16)
    w2b = (w2 * dt).astype(jnp.bfloat16)
    wcb = wc.astype(jnp.bfloat16)
    b2s = b2 * dt
    s = x.astype(jnp.float32)
    for _ in range(N_STEPS):
        h = jnp.maximum(
            jnp.dot(s.astype(jnp.bfloat16), w1b,
                    preferred_element_type=jnp.float32) + b1, 0.0)
        s = s + (jnp.dot(h.astype(jnp.bfloat16), w2b,
                         preferred_element_type=jnp.float32) + b2s)
    return jnp.dot(s.astype(jnp.bfloat16), wcb,
                   preferred_element_type=jnp.float32) + bc


if __name__ == "__main__":
    # Small shapes consistent with the module:
    #   opts.image_size        -> D  (input feature size of the linear ODE)
    #   opts.ch_residual_block -> H  (hidden width of LinearResidualBlock)
    #   opts.num_classes       -> C
    B, D, H, C = 16, 128, 64, 10

    key = jax.random.PRNGKey(0)
    kx, k1, k2, kc = jax.random.split(key, 4)

    # Deterministic init matching ModelBase.init_weights('normal', gain=0.02):
    # weights ~ N(0, 0.02), biases = 0.
    gain = 0.02
    x = jax.random.normal(kx, (B, D), dtype=jnp.float32)
    w1 = gain * jax.random.normal(k1, (D, H), dtype=jnp.float32)
    b1 = jnp.zeros((1, H), dtype=jnp.float32)
    w2 = gain * jax.random.normal(k2, (H, D), dtype=jnp.float32)
    b2 = jnp.zeros((1, D), dtype=jnp.float32)
    wc = gain * jax.random.normal(kc, (D, C), dtype=jnp.float32)
    bc = jnp.zeros((1, C), dtype=jnp.float32)

    out = odenet_model_linear(x, w1, b1, w2, b2, wc, bc, num_classes=C)
    out = jax.block_until_ready(out)
    assert out.shape == (B, C), out.shape

    # Strict check vs a reference mirroring the kernel's bf16-MXU math.
    ref_bf16 = reference_forward_bf16(x, w1, b1, w2, b2, wc, bc)
    err = float(jnp.max(jnp.abs(out - ref_bf16)))
    assert err < 2e-3, err

    # Loose check vs the pure-f32 reference (bf16 operand rounding only).
    ref_f32 = reference_forward_f32(x, w1, b1, w2, b2, wc, bc)
    err32 = float(jnp.max(jnp.abs(out - ref_f32)))
    assert err32 < 5e-2, err32

    # Exercise a batch just above the tile size to hit the multi-tile path
    # (previously the worst-case padding-waste regime).
    B2 = 260
    x2 = jax.random.normal(jax.random.PRNGKey(1), (B2, D), dtype=jnp.float32)
    out2 = jax.block_until_ready(
        odenet_model_linear(x2, w1, b1, w2, b2, wc, bc, num_classes=C))
    assert out2.shape == (B2, C), out2.shape
    ref2 = reference_forward_bf16(x2, w1, b1, w2, b2, wc, bc)
    err2 = float(jnp.max(jnp.abs(out2 - ref2)))
    assert err2 < 2e-3, err2

    print("KERNEL_OK")
</pallas_src>

<mosaic_0001>
module attributes {stable_mosaic.version = 11 : i64} {
  func.func @odenet_linear_kernel(%arg0: i32, %arg1: memref<16x128xf32, #tpu.memory_space<vmem>>, %arg2: memref<128x128xbf16, #tpu.memory_space<vmem>>, %arg3: memref<1x128xf32, #tpu.memory_space<vmem>>, %arg4: memref<128x128xbf16, #tpu.memory_space<vmem>>, %arg5: memref<1x128xf32, #tpu.memory_space<vmem>>, %arg6: memref<128x128xbf16, #tpu.memory_space<vmem>>, %arg7: memref<1x128xf32, #tpu.memory_space<vmem>>, %arg8: memref<16x128xf32, #tpu.memory_space<vmem>>) attributes {dimension_semantics = [#tpu.dimension_semantics<parallel>], iteration_bounds = array<i64: 1>, scalar_prefetch = 0 : i64, scratch_operands = 0 : i64, tpu.core_type = #tpu.core_type<tc>, window_params = [{transform_indices = @transform_0, window_bounds = array<i64: 16, 128>}, {pipeline_mode = #tpu.pipeline_mode<synchronous>, transform_indices = @transform_1, window_bounds = array<i64: 128, 128>}, {pipeline_mode = #tpu.pipeline_mode<synchronous>, transform_indices = @transform_2, window_bounds = array<i64: 1, 128>}, {pipeline_mode = #tpu.pipeline_mode<synchronous>, transform_indices = @transform_3, window_bounds = array<i64: 128, 128>}, {pipeline_mode = #tpu.pipeline_mode<synchronous>, transform_indices = @transform_4, window_bounds = array<i64: 1, 128>}, {pipeline_mode = #tpu.pipeline_mode<synchronous>, transform_indices = @transform_5, window_bounds = array<i64: 128, 128>}, {pipeline_mode = #tpu.pipeline_mode<synchronous>, transform_indices = @transform_6, window_bounds = array<i64: 1, 128>}, {transform_indices = @transform_7, window_bounds = array<i64: 16, 128>}]} {
    %c0 = arith.constant 0 : index
    %c0_0 = arith.constant 0 : index
    %0 = vector.load %arg1[%c0, %c0_0] : memref<16x128xf32, #tpu.memory_space<vmem>>, vector<16x128xf32>
    %c0_1 = arith.constant 0 : index
    %c0_2 = arith.constant 0 : index
    %1 = vector.load %arg2[%c0_1, %c0_2] : memref<128x128xbf16, #tpu.memory_space<vmem>>, vector<128x128xbf16>
    %c0_3 = arith.constant 0 : index
    %c0_4 = arith.constant 0 : index
    %2 = vector.load %arg4[%c0_3, %c0_4] : memref<128x128xbf16, #tpu.memory_space<vmem>>, vector<128x128xbf16>
    %c0_5 = arith.constant 0 : index
    %c0_6 = arith.constant 0 : index
    %3 = vector.load %arg3[%c0_5, %c0_6] : memref<1x128xf32, #tpu.memory_space<vmem>>, vector<1x128xf32>
    %4 = vector.shape_cast %3 : vector<1x128xf32> to vector<1x128xf32>
    %5 = vector.broadcast %4 : vector<1x128xf32> to vector<16x128xf32>
    %c0_7 = arith.constant 0 : index
    %c0_8 = arith.constant 0 : index
    %6 = vector.load %arg5[%c0_7, %c0_8] : memref<1x128xf32, #tpu.memory_space<vmem>>, vector<1x128xf32>
    %7 = vector.shape_cast %6 : vector<1x128xf32> to vector<1x128xf32>
    %8 = vector.broadcast %7 : vector<1x128xf32> to vector<16x128xf32>
    %c0_i32 = arith.constant 0 : i32
    %9 = arith.truncf %0 : vector<16x128xf32> to vector<16x128xbf16>
    %cst = arith.constant dense<0.000000e+00> : vector<16x128xf32>
    %10 = tpu.matmul %9, %1, %cst {dimension_numbers = #tpu.dot_dimension_numbers<[1], [0], [0], [1], [0, 0, 1, 1], [], []>} : vector<16x128xbf16>, vector<128x128xbf16>, vector<16x128xf32> -> vector<16x128xf32>
    %11 = arith.addf %10, %5 : vector<16x128xf32>
    %cst_9 = arith.constant 0.000000e+00 : f32
    %12 = vector.broadcast %cst_9 : f32 to vector<16x128xf32>
    %13 = arith.maximumf %11, %12 : vector<16x128xf32>
    %14 = arith.truncf %13 : vector<16x128xf32> to vector<16x128xbf16>
    %cst_10 = arith.constant dense<0.000000e+00> : vector<16x128xf32>
    %15 = tpu.matmul %14, %2, %cst_10 {dimension_numbers = #tpu.dot_dimension_numbers<[1], [0], [0], [1], [0, 0, 1, 1], [], []>} : vector<16x128xbf16>, vector<128x128xbf16>, vector<16x128xf32> -> vector<16x128xf32>
    %16 = arith.addf %15, %8 : vector<16x128xf32>
    %17 = arith.addf %0, %16 : vector<16x128xf32>
    %c1_i32 = arith.constant 1 : i32
    %18 = arith.truncf %17 : vector<16x128xf32> to vector<16x128xbf16>
    %cst_11 = arith.constant dense<0.000000e+00> : vector<16x128xf32>
    %19 = tpu.matmul %18, %1, %cst_11 {dimension_numbers = #tpu.dot_dimension_numbers<[1], [0], [0], [1], [0, 0, 1, 1], [], []>} : vector<16x128xbf16>, vector<128x128xbf16>, vector<16x128xf32> -> vector<16x128xf32>
    %20 = arith.addf %19, %5 : vector<16x128xf32>
    %cst_12 = arith.constant 0.000000e+00 : f32
    %21 = vector.broadcast %cst_12 : f32 to vector<16x128xf32>
    %22 = arith.maximumf %20, %21 : vector<16x128xf32>
    %23 = arith.truncf %22 : vector<16x128xf32> to vector<16x128xbf16>
    %cst_13 = arith.constant dense<0.000000e+00> : vector<16x128xf32>
    %24 = tpu.matmul %23, %2, %cst_13 {dimension_numbers = #tpu.dot_dimension_numbers<[1], [0], [0], [1], [0, 0, 1, 1], [], []>} : vector<16x128xbf16>, vector<128x128xbf16>, vector<16x128xf32> -> vector<16x128xf32>
    %25 = arith.addf %24, %8 : vector<16x128xf32>
    %26 = arith.addf %17, %25 : vector<16x128xf32>
    %c2_i32 = arith.constant 2 : i32
    %27 = arith.truncf %26 : vector<16x128xf32> to vector<16x128xbf16>
    %cst_14 = arith.constant dense<0.000000e+00> : vector<16x128xf32>
    %28 = tpu.matmul %27, %1, %cst_14 {dimension_numbers = #tpu.dot_dimension_numbers<[1], [0], [0], [1], [0, 0, 1, 1], [], []>} : vector<16x128xbf16>, vector<128x128xbf16>, vector<16x128xf32> -> vector<16x128xf32>
    %29 = arith.addf %28, %5 : vector<16x128xf32>
    %cst_15 = arith.constant 0.000000e+00 : f32
    %30 = vector.broadcast %cst_15 : f32 to vector<16x128xf32>
    %31 = arith.maximumf %29, %30 : vector<16x128xf32>
    %32 = arith.truncf %31 : vector<16x128xf32> to vector<16x128xbf16>
    %cst_16 = arith.constant dense<0.000000e+00> : vector<16x128xf32>
    %33 = tpu.matmul %32, %2, %cst_16 {dimension_numbers = #tpu.dot_dimension_numbers<[1], [0], [0], [1], [0, 0, 1, 1], [], []>} : vector<16x128xbf16>, vector<128x128xbf16>, vector<16x128xf32> -> vector<16x128xf32>
    %34 = arith.addf %33, %8 : vector<16x128xf32>
    %35 = arith.addf %26, %34 : vector<16x128xf32>
    %c3_i32 = arith.constant 3 : i32
    %36 = arith.truncf %35 : vector<16x128xf32> to vector<16x128xbf16>
    %cst_17 = arith.constant dense<0.000000e+00> : vector<16x128xf32>
    %37 = tpu.matmul %36, %1, %cst_17 {dimension_numbers = #tpu.dot_dimension_numbers<[1], [0], [0], [1], [0, 0, 1, 1], [], []>} : vector<16x128xbf16>, vector<128x128xbf16>, vector<16x128xf32> -> vector<16x128xf32>
    %38 = arith.addf %37, %5 : vector<16x128xf32>
    %cst_18 = arith.constant 0.000000e+00 : f32
    %39 = vector.broadcast %cst_18 : f32 to vector<16x128xf32>
    %40 = arith.maximumf %38, %39 : vector<16x128xf32>
    %41 = arith.truncf %40 : vector<16x128xf32> to vector<16x128xbf16>
    %cst_19 = arith.constant dense<0.000000e+00> : vector<16x128xf32>
    %42 = tpu.matmul %41, %2, %cst_19 {dimension_numbers = #tpu.dot_dimension_numbers<[1], [0], [0], [1], [0, 0, 1, 1], [], []>} : vector<16x128xbf16>, vector<128x128xbf16>, vector<16x128xf32> -> vector<16x128xf32>
    %43 = arith.addf %42, %8 : vector<16x128xf32>
    %44 = arith.addf %35, %43 : vector<16x128xf32>
    %c4_i32 = arith.constant 4 : i32
    %45 = arith.truncf %44 : vector<16x128xf32> to vector<16x128xbf16>
    %cst_20 = arith.constant dense<0.000000e+00> : vector<16x128xf32>
    %46 = tpu.matmul %45, %1, %cst_20 {dimension_numbers = #tpu.dot_dimension_numbers<[1], [0], [0], [1], [0, 0, 1, 1], [], []>} : vector<16x128xbf16>, vector<128x128xbf16>, vector<16x128xf32> -> vector<16x128xf32>
    %47 = arith.addf %46, %5 : vector<16x128xf32>
    %cst_21 = arith.constant 0.000000e+00 : f32
    %48 = vector.broadcast %cst_21 : f32 to vector<16x128xf32>
    %49 = arith.maximumf %47, %48 : vector<16x128xf32>
    %50 = arith.truncf %49 : vector<16x128xf32> to vector<16x128xbf16>
    %cst_22 = arith.constant dense<0.000000e+00> : vector<16x128xf32>
    %51 = tpu.matmul %50, %2, %cst_22 {dimension_numbers = #tpu.dot_dimension_numbers<[1], [0], [0], [1], [0, 0, 1, 1], [], []>} : vector<16x128xbf16>, vector<128x128xbf16>, vector<16x128xf32> -> vector<16x128xf32>
    %52 = arith.addf %51, %8 : vector<16x128xf32>
    %53 = arith.addf %44, %52 : vector<16x128xf32>
    %c5_i32 = arith.constant 5 : i32
    %54 = arith.truncf %53 : vector<16x128xf32> to vector<16x128xbf16>
    %cst_23 = arith.constant dense<0.000000e+00> : vector<16x128xf32>
    %55 = tpu.matmul %54, %1, %cst_23 {dimension_numbers = #tpu.dot_dimension_numbers<[1], [0], [0], [1], [0, 0, 1, 1], [], []>} : vector<16x128xbf16>, vector<128x128xbf16>, vector<16x128xf32> -> vector<16x128xf32>
    %56 = arith.addf %55, %5 : vector<16x128xf32>
    %cst_24 = arith.constant 0.000000e+00 : f32
    %57 = vector.broadcast %cst_24 : f32 to vector<16x128xf32>
    %58 = arith.maximumf %56, %57 : vector<16x128xf32>
    %59 = arith.truncf %58 : vector<16x128xf32> to vector<16x128xbf16>
    %cst_25 = arith.constant dense<0.000000e+00> : vector<16x128xf32>
    %60 = tpu.matmul %59, %2, %cst_25 {dimension_numbers = #tpu.dot_dimension_numbers<[1], [0], [0], [1], [0, 0, 1, 1], [], []>} : vector<16x128xbf16>, vector<128x128xbf16>, vector<16x128xf32> -> vector<16x128xf32>
    %61 = arith.addf %60, %8 : vector<16x128xf32>
    %62 = arith.addf %53, %61 : vector<16x128xf32>
    %c6_i32 = arith.constant 6 : i32
    %63 = arith.truncf %62 : vector<16x128xf32> to vector<16x128xbf16>
    %cst_26 = arith.constant dense<0.000000e+00> : vector<16x128xf32>
    %64 = tpu.matmul %63, %1, %cst_26 {dimension_numbers = #tpu.dot_dimension_numbers<[1], [0], [0], [1], [0, 0, 1, 1], [], []>} : vector<16x128xbf16>, vector<128x128xbf16>, vector<16x128xf32> -> vector<16x128xf32>
    %65 = arith.addf %64, %5 : vector<16x128xf32>
    %cst_27 = arith.constant 0.000000e+00 : f32
    %66 = vector.broadcast %cst_27 : f32 to vector<16x128xf32>
    %67 = arith.maximumf %65, %66 : vector<16x128xf32>
    %68 = arith.truncf %67 : vector<16x128xf32> to vector<16x128xbf16>
    %cst_28 = arith.constant dense<0.000000e+00> : vector<16x128xf32>
    %69 = tpu.matmul %68, %2, %cst_28 {dimension_numbers = #tpu.dot_dimension_numbers<[1], [0], [0], [1], [0, 0, 1, 1], [], []>} : vector<16x128xbf16>, vector<128x128xbf16>, vector<16x128xf32> -> vector<16x128xf32>
    %70 = arith.addf %69, %8 : vector<16x128xf32>
    %71 = arith.addf %62, %70 : vector<16x128xf32>
    %c7_i32 = arith.constant 7 : i32
    %72 = arith.truncf %71 : vector<16x128xf32> to vector<16x128xbf16>
    %cst_29 = arith.constant dense<0.000000e+00> : vector<16x128xf32>
    %73 = tpu.matmul %72, %1, %cst_29 {dimension_numbers = #tpu.dot_dimension_numbers<[1], [0], [0], [1], [0, 0, 1, 1], [], []>} : vector<16x128xbf16>, vector<128x128xbf16>, vector<16x128xf32> -> vector<16x128xf32>
    %74 = arith.addf %73, %5 : vector<16x128xf32>
    %cst_30 = arith.constant 0.000000e+00 : f32
    %75 = vector.broadcast %cst_30 : f32 to vector<16x128xf32>
    %76 = arith.maximumf %74, %75 : vector<16x128xf32>
    %77 = arith.truncf %76 : vector<16x128xf32> to vector<16x128xbf16>
    %cst_31 = arith.constant dense<0.000000e+00> : vector<16x128xf32>
    %78 = tpu.matmul %77, %2, %cst_31 {dimension_numbers = #tpu.dot_dimension_numbers<[1], [0], [0], [1], [0, 0, 1, 1], [], []>} : vector<16x128xbf16>, vector<128x128xbf16>, vector<16x128xf32> -> vector<16x128xf32>
    %79 = arith.addf %78, %8 : vector<16x128xf32>
    %80 = arith.addf %71, %79 : vector<16x128xf32>
    %c0_32 = arith.constant 0 : index
    %c0_33 = arith.constant 0 : index
    %81 = vector.load %arg6[%c0_32, %c0_33] : memref<128x128xbf16, #tpu.memory_space<vmem>>, vector<128x128xbf16>
    %c0_34 = arith.constant 0 : index
    %c0_35 = arith.constant 0 : index
    %82 = vector.load %arg7[%c0_34, %c0_35] : memref<1x128xf32, #tpu.memory_space<vmem>>, vector<1x128xf32>
    %83 = vector.shape_cast %82 : vector<1x128xf32> to vector<1x128xf32>
    %84 = vector.broadcast %83 : vector<1x128xf32> to vector<16x128xf32>
    %85 = arith.truncf %80 : vector<16x128xf32> to vector<16x128xbf16>
    %cst_36 = arith.constant dense<0.000000e+00> : vector<16x128xf32>
    %86 = tpu.matmul %85, %81, %cst_36 {dimension_numbers = #tpu.dot_dimension_numbers<[1], [0], [0], [1], [0, 0, 1, 1], [], []>} : vector<16x128xbf16>, vector<128x128xbf16>, vector<16x128xf32> -> vector<16x128xf32>
    %87 = arith.addf %86, %84 : vector<16x128xf32>
    %c0_37 = arith.constant 0 : index
    %c0_38 = arith.constant 0 : index
    %88 = vector.load %arg8[%c0_37, %c0_38] : memref<16x128xf32, #tpu.memory_space<vmem>>, vector<16x128xf32>
    tpu.vector_store %arg8[%c0_37, %c0_38], %87 {strides = array<i32>} : memref<16x128xf32, #tpu.memory_space<vmem>>, vector<16x128xf32>,
    return
  }
  func.func @transform_0(%arg0: i32) -> (i32, i32) {
    %c0_i32 = arith.constant 0 : i32
    %c0_i32_0 = arith.constant 0 : i32
    return %arg0, %c0_i32 : i32, i32
  }
  func.func @transform_1(%arg0: i32) -> (i32, i32) {
    %c0_i32 = arith.constant 0 : i32
    %c0_i32_0 = arith.constant 0 : i32
    %c0_i32_1 = arith.constant 0 : i32
    return %c0_i32, %c0_i32_0 : i32, i32
  }
  func.func @transform_2(%arg0: i32) -> (i32, i32) {
    %c0_i32 = arith.constant 0 : i32
    %c0_i32_0 = arith.constant 0 : i32
    %c0_i32_1 = arith.constant 0 : i32
    return %c0_i32, %c0_i32_0 : i32, i32
  }
  func.func @transform_3(%arg0: i32) -> (i32, i32) {
    %c0_i32 = arith.constant 0 : i32
    %c0_i32_0 = arith.constant 0 : i32
    %c0_i32_1 = arith.constant 0 : i32
    return %c0_i32, %c0_i32_0 : i32, i32
  }
  func.func @transform_4(%arg0: i32) -> (i32, i32) {
    %c0_i32 = arith.constant 0 : i32
    %c0_i32_0 = arith.constant 0 : i32
    %c0_i32_1 = arith.constant 0 : i32
    return %c0_i32, %c0_i32_0 : i32, i32
  }
  func.func @transform_5(%arg0: i32) -> (i32, i32) {
    %c0_i32 = arith.constant 0 : i32
    %c0_i32_0 = arith.constant 0 : i32
    %c0_i32_1 = arith.constant 0 : i32
    return %c0_i32, %c0_i32_0 : i32, i32
  }
  func.func @transform_6(%arg0: i32) -> (i32, i32) {
    %c0_i32 = arith.constant 0 : i32
    %c0_i32_0 = arith.constant 0 : i32
    %c0_i32_1 = arith.constant 0 : i32
    return %c0_i32, %c0_i32_0 : i32, i32
  }
  func.func @transform_7(%arg0: i32) -> (i32, i32) {
    %c0_i32 = arith.constant 0 : i32
    %c0_i32_0 = arith.constant 0 : i32
    return %arg0, %c0_i32 : i32, i32
  }
}

</mosaic_0001>

<llo_original>
// kernel: odenet_model_linear.1
$region0: #{odenet_model_linear.1}
  #allocation0 [shape = 'u32[]', space=smem, size = 0x4, offset = 0x4, fixed_abs, tag = 'smem constant byte address 0x4 - core index']
  #allocation1 [shape = 'u32[144,128]{1,0:T(1,128)}', space=vmem, size = 0x12000, scoped, tag = 'internal scratch']
  %s0 = inlined_call_operand.vmem [shape: f32[16,128], index: 0, kind: input, shape index: {}]
  %s1 = inlined_call_operand.vmem [shape: bf16[128,128], index: 1, kind: input, shape index: {}]
  %s2 = inlined_call_operand.vmem [shape: f32[1,128], index: 2, kind: input, shape index: {}]
  %s3 = inlined_call_operand.vmem [shape: bf16[128,128], index: 3, kind: input, shape index: {}]
  %s4 = inlined_call_operand.vmem [shape: f32[1,128], index: 4, kind: input, shape index: {}]
  %s5 = inlined_call_operand.vmem [shape: bf16[128,128], index: 5, kind: input, shape index: {}]
  %s6 = inlined_call_operand.vmem [shape: f32[1,128], index: 6, kind: input, shape index: {}]
  %s7 = inlined_call_operand.hbm [shape: f32[16,128], index: 7, kind: output, shape index: {}]
  %s8 = sld [smem:[#allocation0]]
  $region38: #{odenet_model_linear.1} parent=0
    _
  %s10 = ssub.s32 1, %s8
  %s11 = scalar_select 0, %s10, %s8
  $region1: #{odenet_model_linear.1} parent=0
    #allocation2 [shape = 'u8[8192]{0}', space=vmem, size = 0x2000, scoped, tag = 'output window, operand 0, single buffered']
    #allocation3 [shape = 's32[1]{0}', space=sflag, size = 0x4, scoped, tag = 'scoped memory for odenet_model_linear.1']
    %12 = vsyncpa [#allocation3], 0
    // Predicated region
    $region2: #{odenet_model_linear.1} parent=1 // pred_check
      _
    $region3: #{odenet_model_linear.1} parent=1 // pred_check_branch
      %14 = sbr.rel (0) target = $region5
    $region4: #{odenet_model_linear.1} parent=1 // pred_region
      _
    $region5: #{odenet_model_linear.1} parent=1 // pred_fallthru
      _
    // Predicated region
    $region6: #{odenet_model_linear.1} parent=1 // pred_check
      _
    $region7: #{odenet_model_linear.1} parent=1 // pred_check_branch
      %16 = sbr.rel (0) target = $region9
    $region8: #{odenet_model_linear.1} parent=1 // pred_region
      _
    $region9: #{odenet_model_linear.1} parent=1 // pred_fallthru
      _
    // Predicated region
    $region10: #{odenet_model_linear.1} parent=1 // pred_check
      _
    $region11: #{odenet_model_linear.1} parent=1 // pred_check_branch
      %18 = sbr.rel (0) target = $region13
    $region12: #{odenet_model_linear.1} parent=1 // pred_region
      _
    $region13: #{odenet_model_linear.1} parent=1 // pred_fallthru
      _
    // Predicated region
    $region14: #{odenet_model_linear.1} parent=1 // pred_check
      _
    $region15: #{odenet_model_linear.1} parent=1 // pred_check_branch
      %20 = sbr.rel (0) target = $region17
    $region16: #{odenet_model_linear.1} parent=1 // pred_region
      _
    $region17: #{odenet_model_linear.1} parent=1 // pred_fallthru
      _
    // Predicated region
    $region18: #{odenet_model_linear.1} parent=1 // pred_check
      _
    $region19: #{odenet_model_linear.1} parent=1 // pred_check_branch
      %22 = sbr.rel (0) target = $region21
    $region20: #{odenet_model_linear.1} parent=1 // pred_region
      _
    $region21: #{odenet_model_linear.1} parent=1 // pred_fallthru
      _
    // Predicated region
    $region22: #{odenet_model_linear.1} parent=1 // pred_check
      _
    $region23: #{odenet_model_linear.1} parent=1 // pred_check_branch
      %24 = sbr.rel (0) target = $region25
    $region24: #{odenet_model_linear.1} parent=1 // pred_region
      _
    $region25: #{odenet_model_linear.1} parent=1 // pred_fallthru
      _
    // Predicated region
    $region26: #{odenet_model_linear.1} parent=1 // pred_check
      _
    $region27: #{odenet_model_linear.1} parent=1 // pred_check_branch
      %26 = sbr.rel (0) target = $region29
    $region28: #{odenet_model_linear.1} parent=1 // pred_region
      _
    $region29: #{odenet_model_linear.1} parent=1 // pred_fallthru
      _
    %v28 = vld [vmem:[%s0] sm:$0xff]
    %v29 = vld [vmem:[%s0 + $0x8] sm:$0xff]
    %v30 = vld [vmem:[%s1] sm:$0xf]
    %v31 = vld [vmem:[%s1 + $0x4] sm:$0xf]
    %v32 = vld [vmem:[%s1 + $0x8] sm:$0xf]
    %v33 = vld [vmem:[%s1 + $0xc] sm:$0xf]
    %v34 = vld [vmem:[%s1 + $0x10] sm:$0xf]
    %v35 = vld [vmem:[%s1 + $0x14] sm:$0xf]
    %v36 = vld [vmem:[%s1 + $0x18] sm:$0xf]
    %v37 = vld [vmem:[%s1 + $0x1c] sm:$0xf]
    %v38 = vld [vmem:[%s1 + $0x20] sm:$0xf]
    %v39 = vld [vmem:[%s1 + $0x24] sm:$0xf]
    %v40 = vld [vmem:[%s1 + $0x28] sm:$0xf]
    %v41 = vld [vmem:[%s1 + $0x2c] sm:$0xf]
    %v42 = vld [vmem:[%s1 + $0x30] sm:$0xf]
    %v43 = vld [vmem:[%s1 + $0x34] sm:$0xf]
    %v44 = vld [vmem:[%s1 + $0x38] sm:$0xf]
    %v45 = vld [vmem:[%s1 + $0x3c] sm:$0xf]
    %v46 = vld [vmem:[%s3] sm:$0xf]
    %v47 = vld [vmem:[%s3 + $0x4] sm:$0xf]
    %v48 = vld [vmem:[%s3 + $0x8] sm:$0xf]
    %v49 = vld [vmem:[%s3 + $0xc] sm:$0xf]
    %v50 = vld [vmem:[%s3 + $0x10] sm:$0xf]
    %v51 = vld [vmem:[%s3 + $0x14] sm:$0xf]
    %v52 = vld [vmem:[%s3 + $0x18] sm:$0xf]
    %v53 = vld [vmem:[%s3 + $0x1c] sm:$0xf]
    %v54 = vld [vmem:[%s3 + $0x20] sm:$0xf]
    %v55 = vld [vmem:[%s3 + $0x24] sm:$0xf]
    %v56 = vld [vmem:[%s3 + $0x28] sm:$0xf]
    %v57 = vld [vmem:[%s3 + $0x2c] sm:$0xf]
    %v58 = vld [vmem:[%s3 + $0x30] sm:$0xf]
    %v59 = vld [vmem:[%s3 + $0x34] sm:$0xf]
    %v60 = vld [vmem:[%s3 + $0x38] sm:$0xf]
    %v61 = vld [vmem:[%s3 + $0x3c] sm:$0xf]
    %v62 = vld [vmem:[%s2] sm:$0x1]
    %v64 = vlaneseq
    %v65 = vshrl.u32 %v64, 7
    %v66 = vsub.s32 0, %v65
    %v67 = vrot.slane %v62, %v66
    %v69 = vld [vmem:[%s4] sm:$0x1]
    %v71 = vlaneseq
    %v72 = vshrl.u32 %v71, 7
    %v73 = vsub.s32 0, %v72
    %v74 = vrot.slane %v69, %v73
    %v76 = vpack.c.bf16 %v29, %v28
    %v93 = vunpack.c.l.b16 %v30
    %v94 = vunpack.c.l.b16 %v31
    %v95 = vunpack.c.l.b16 %v32
    %v96 = vunpack.c.l.b16 %v33
    %v97 = vunpack.c.l.b16 %v34
    %v98 = vunpack.c.l.b16 %v35
    %v99 = vunpack.c.l.b16 %v36
    %v100 = vunpack.c.l.b16 %v37
    %v101 = vunpack.c.l.b16 %v38
    %v102 = vunpack.c.l.b16 %v39
    %v103 = vunpack.c.l.b16 %v40
    %v104 = vunpack.c.l.b16 %v41
    %v105 = vunpack.c.l.b16 %v42
    %v106 = vunpack.c.l.b16 %v43
    %v107 = vunpack.c.l.b16 %v44
    %v108 = vunpack.c.l.b16 %v45
    %v109 = vpack.c.b16 %v94, %v93
    %v110 = vpack.c.b16 %v96, %v95
    %v111 = vpack.c.b16 %v98, %v97
    %v112 = vpack.c.b16 %v100, %v99
    %v113 = vpack.c.b16 %v102, %v101
    %v114 = vpack.c.b16 %v104, %v103
    %v115 = vpack.c.b16 %v106, %v105
    %v116 = vpack.c.b16 %v108, %v107
    %125 = vmatprep.subr.bf16.mxu0 0
    %126 = vmatpush1.bf16.msra.mxu0 %v109
    %127 = vmatprep.subr.bf16.mxu0 0
    %128 = vmatpush1.bf16.msra.mxu0 %v110
    %129 = vmatprep.subr.bf16.mxu0 0
    %130 = vmatpush1.bf16.msra.mxu0 %v111
    %131 = vmatprep.subr.bf16.mxu0 0
    %132 = vmatpush1.bf16.msra.mxu0 %v112
    %133 = vmatprep.subr.bf16.mxu0 0
    %134 = vmatpush1.bf16.msra.mxu0 %v113
    %135 = vmatprep.subr.bf16.mxu0 0
    %136 = vmatpush1.bf16.msra.mxu0 %v114
    %137 = vmatprep.subr.bf16.mxu0 0
    %138 = vmatpush1.bf16.msra.mxu0 %v115
    %139 = vmatprep.subr.bf16.mxu0 0
    %140 = vmatpush1.bf16.msra.mxu0 %v116
    %141 = vmatprep.subr.bf16.mxu0 0
    %142 = vmatpush1.bf16.msra.mxu0 0
    %143 = vmatprep.subr.bf16.mxu0 0
    %144 = vmatpush1.bf16.msra.mxu0 0
    %145 = vmatprep.subr.bf16.mxu0 0
    %146 = vmatpush1.bf16.msra.mxu0 0
    %147 = vmatprep.subr.bf16.mxu0 0
    %148 = vmatpush1.bf16.msra.mxu0 0
    %149 = vmatprep.subr.bf16.mxu0 0
    %150 = vmatpush1.bf16.msra.mxu0 0
    %151 = vmatprep.subr.bf16.mxu0 0
    %152 = vmatpush1.bf16.msra.mxu0 0
    %153 = vmatprep.subr.bf16.mxu0 0
    %154 = vmatpush1.bf16.msra.mxu0 0
    %155 = vmatprep.subr.bf16.mxu0 0
    %156 = vmatpush1.bf16.msra.mxu0 0
    %157 = vmatprep.mubr.bf16.mxu0 0
    %158 = vmatmul.mubr.bf16.gmra.mrb[0].mxu0 %v76
    %v159 = vpop.f32.mrb[0].mxu0
    %v160 = vadd.f32 %v67, %v159
    %v161 = vpop.f32.mrb[0].mxu0
    %v162 = vpop.f32.mrb[0].mxu0
    %v163 = vadd.f32 %v67, %v162
    %v164 = vpop.f32.mrb[0].mxu0
    %165 = vdwg.mxu0
    %v166 = vmax.f32 %v160, 0.0
    %v167 = vmax.f32 %v163, 0.0
    %v168 = vpack.c.bf16 %v167, %v166
    %v185 = vunpack.c.l.b16 %v46
    %v186 = vunpack.c.l.b16 %v47
    %v187 = vunpack.c.l.b16 %v48
    %v188 = vunpack.c.l.b16 %v49
    %v189 = vunpack.c.l.b16 %v50
    %v190 = vunpack.c.l.b16 %v51
    %v191 = vunpack.c.l.b16 %v52
    %v192 = vunpack.c.l.b16 %v53
    %v193 = vunpack.c.l.b16 %v54
    %v194 = vunpack.c.l.b16 %v55
    %v195 = vunpack.c.l.b16 %v56
    %v196 = vunpack.c.l.b16 %v57
    %v197 = vunpack.c.l.b16 %v58
    %v198 = vunpack.c.l.b16 %v59
    %v199 = vunpack.c.l.b16 %v60
    %v200 = vunpack.c.l.b16 %v61
    %v201 = vpack.c.b16 %v186, %v185
    %v202 = vpack.c.b16 %v188, %v187
    %v203 = vpack.c.b16 %v190, %v189
    %v204 = vpack.c.b16 %v192, %v191
    %v205 = vpack.c.b16 %v194, %v193
    %v206 = vpack.c.b16 %v196, %v195
    %v207 = vpack.c.b16 %v198, %v197
    %v208 = vpack.c.b16 %v200, %v199
    %217 = vmatprep.subr.bf16.mxu0 0
    %218 = vmatpush1.bf16.msra.mxu0 %v201
    %219 = vmatprep.subr.bf16.mxu0 0
    %220 = vmatpush1.bf16.msra.mxu0 %v202
    %221 = vmatprep.subr.bf16.mxu0 0
    %222 = vmatpush1.bf16.msra.mxu0 %v203
    %223 = vmatprep.subr.bf16.mxu0 0
    %224 = vmatpush1.bf16.msra.mxu0 %v204
    %225 = vmatprep.subr.bf16.mxu0 0
    %226 = vmatpush1.bf16.msra.mxu0 %v205
    %227 = vmatprep.subr.bf16.mxu0 0
    %228 = vmatpush1.bf16.msra.mxu0 %v206
    %229 = vmatprep.subr.bf16.mxu0 0
    %230 = vmatpush1.bf16.msra.mxu0 %v207
    %231 = vmatprep.subr.bf16.mxu0 0
    %232 = vmatpush1.bf16.msra.mxu0 %v208
    %233 = vmatprep.subr.bf16.mxu0 0
    %234 = vmatpush1.bf16.msra.mxu0 0
    %235 = vmatprep.subr.bf16.mxu0 0
    %236 = vmatpush1.bf16.msra.mxu0 0
    %237 = vmatprep.subr.bf16.mxu0 0
    %238 = vmatpush1.bf16.msra.mxu0 0
    %239 = vmatprep.subr.bf16.mxu0 0
    %240 = vmatpush1.bf16.msra.mxu0 0
    %241 = vmatprep.subr.bf16.mxu0 0
    %242 = vmatpush1.bf16.msra.mxu0 0
    %243 = vmatprep.subr.bf16.mxu0 0
    %244 = vmatpush1.bf16.msra.mxu0 0
    %245 = vmatprep.subr.bf16.mxu0 0
    %246 = vmatpush1.bf16.msra.mxu0 0
    %247 = vmatprep.subr.bf16.mxu0 0
    %248 = vmatpush1.bf16.msra.mxu0 0
    %249 = vmatprep.mubr.bf16.mxu0 0
    %250 = vmatmul.mubr.bf16.gmra.mrb[0].mxu0 %v168
    %v251 = vpop.f32.mrb[0].mxu0
    %v252 = vadd.f32 %v74, %v251
    %v253 = vpop.f32.mrb[0].mxu0
    %v254 = vpop.f32.mrb[0].mxu0
    %v255 = vadd.f32 %v74, %v254
    %v256 = vpop.f32.mrb[0].mxu0
    %257 = vdwg.mxu0
    %v258 = vadd.f32 %v28, %v252
    %v259 = vadd.f32 %v29, %v255
    %v260 = vpack.c.bf16 %v259, %v258
    %261 = vmatprep.subr.bf16.mxu0 0
    %262 = vmatpush1.bf16.msra.mxu0 %v109
    %263 = vmatprep.subr.bf16.mxu0 0
    %264 = vmatpush1.bf16.msra.mxu0 %v110
    %265 = vmatprep.subr.bf16.mxu0 0
    %266 = vmatpush1.bf16.msra.mxu0 %v111
    %267 = vmatprep.subr.bf16.mxu0 0
    %268 = vmatpush1.bf16.msra.mxu0 %v112
    %269 = vmatprep.subr.bf16.mxu0 0
    %270 = vmatpush1.bf16.msra.mxu0 %v113
    %271 = vmatprep.subr.bf16.mxu0 0
    %272 = vmatpush1.bf16.msra.mxu0 %v114
    %273 = vmatprep.subr.bf16.mxu0 0
    %274 = vmatpush1.bf16.msra.mxu0 %v115
    %275 = vmatprep.subr.bf16.mxu0 0
    %276 = vmatpush1.bf16.msra.mxu0 %v116
    %277 = vmatprep.subr.bf16.mxu0 0
    %278 = vmatpush1.bf16.msra.mxu0 0
    %279 = vmatprep.subr.bf16.mxu0 0
    %280 = vmatpush1.bf16.msra.mxu0 0
    %281 = vmatprep.subr.bf16.mxu0 0
    %282 = vmatpush1.bf16.msra.mxu0 0
    %283 = vmatprep.subr.bf16.mxu0 0
    %284 = vmatpush1.bf16.msra.mxu0 0
    %285 = vmatprep.subr.bf16.mxu0 0
    %286 = vmatpush1.bf16.msra.mxu0 0
    %287 = vmatprep.subr.bf16.mxu0 0
    %288 = vmatpush1.bf16.msra.mxu0 0
    %289 = vmatprep.subr.bf16.mxu0 0
    %290 = vmatpush1.bf16.msra.mxu0 0
    %291 = vmatprep.subr.bf16.mxu0 0
    %292 = vmatpush1.bf16.msra.mxu0 0
    %293 = vmatprep.mubr.bf16.mxu0 0
    %294 = vmatmul.mubr.bf16.gmra.mrb[0].mxu0 %v260
    %v295 = vpop.f32.mrb[0].mxu0
    %v296 = vadd.f32 %v67, %v295
    %v297 = vpop.f32.mrb[0].mxu0
    %v298 = vpop.f32.mrb[0].mxu0
    %v299 = vadd.f32 %v67, %v298
    %v300 = vpop.f32.mrb[0].mxu0
    %301 = vdwg.mxu0
    %v302 = vmax.f32 %v296, 0.0
    %v303 = vmax.f32 %v299, 0.0
    %v304 = vpack.c.bf16 %v303, %v302
    %305 = vmatprep.subr.bf16.mxu0 0
    %306 = vmatpush1.bf16.msra.mxu0 %v201
    %307 = vmatprep.subr.bf16.mxu0 0
    %308 = vmatpush1.bf16.msra.mxu0 %v202
    %309 = vmatprep.subr.bf16.mxu0 0
    %310 = vmatpush1.bf16.msra.mxu0 %v203
    %311 = vmatprep.subr.bf16.mxu0 0
    %312 = vmatpush1.bf16.msra.mxu0 %v204
    %313 = vmatprep.subr.bf16.mxu0 0
    %314 = vmatpush1.bf16.msra.mxu0 %v205
    %315 = vmatprep.subr.bf16.mxu0 0
    %316 = vmatpush1.bf16.msra.mxu0 %v206
    %317 = vmatprep.subr.bf16.mxu0 0
    %318 = vmatpush1.bf16.msra.mxu0 %v207
    %319 = vmatprep.subr.bf16.mxu0 0
    %320 = vmatpush1.bf16.msra.mxu0 %v208
    %321 = vmatprep.subr.bf16.mxu0 0
    %322 = vmatpush1.bf16.msra.mxu0 0
    %323 = vmatprep.subr.bf16.mxu0 0
    %324 = vmatpush1.bf16.msra.mxu0 0
    %325 = vmatprep.subr.bf16.mxu0 0
    %326 = vmatpush1.bf16.msra.mxu0 0
    %327 = vmatprep.subr.bf16.mxu0 0
    %328 = vmatpush1.bf16.msra.mxu0 0
    %329 = vmatprep.subr.bf16.mxu0 0
    %330 = vmatpush1.bf16.msra.mxu0 0
    %331 = vmatprep.subr.bf16.mxu0 0
    %332 = vmatpush1.bf16.msra.mxu0 0
    %333 = vmatprep.subr.bf16.mxu0 0
    %334 = vmatpush1.bf16.msra.mxu0 0
    %335 = vmatprep.subr.bf16.mxu0 0
    %336 = vmatpush1.bf16.msra.mxu0 0
    %337 = vmatprep.mubr.bf16.mxu0 0
    %338 = vmatmul.mubr.bf16.gmra.mrb[0].mxu0 %v304
    %v339 = vpop.f32.mrb[0].mxu0
    %v340 = vadd.f32 %v74, %v339
    %v341 = vpop.f32.mrb[0].mxu0
    %v342 = vpop.f32.mrb[0].mxu0
    %v343 = vadd.f32 %v74, %v342
    %v344 = vpop.f32.mrb[0].mxu0
    %345 = vdwg.mxu0
    %v346 = vadd.f32 %v258, %v340
    %v347 = vadd.f32 %v259, %v343
    %v348 = vpack.c.bf16 %v347, %v346
    %349 = vmatprep.subr.bf16.mxu0 0
    %350 = vmatpush1.bf16.msra.mxu0 %v109
    %351 = vmatprep.subr.bf16.mxu0 0
    %352 = vmatpush1.bf16.msra.mxu0 %v110
    %353 = vmatprep.subr.bf16.mxu0 0
    %354 = vmatpush1.bf16.msra.mxu0 %v111
    %355 = vmatprep.subr.bf16.mxu0 0
    %356 = vmatpush1.bf16.msra.mxu0 %v112
    %357 = vmatprep.subr.bf16.mxu0 0
    %358 = vmatpush1.bf16.msra.mxu0 %v113
    %359 = vmatprep.subr.bf16.mxu0 0
    %360 = vmatpush1.bf16.msra.mxu0 %v114
    %361 = vmatprep.subr.bf16.mxu0 0
    %362 = vmatpush1.bf16.msra.mxu0 %v115
    %363 = vmatprep.subr.bf16.mxu0 0
    %364 = vmatpush1.bf16.msra.mxu0 %v116
    %365 = vmatprep.subr.bf16.mxu0 0
    %366 = vmatpush1.bf16.msra.mxu0 0
    %367 = vmatprep.subr.bf16.mxu0 0
    %368 = vmatpush1.bf16.msra.mxu0 0
    %369 = vmatprep.subr.bf16.mxu0 0
    %370 = vmatpush1.bf16.msra.mxu0 0
    %371 = vmatprep.subr.bf16.mxu0 0
    %372 = vmatpush1.bf16.msra.mxu0 0
    %373 = vmatprep.subr.bf16.mxu0 0
    %374 = vmatpush1.bf16.msra.mxu0 0
    %375 = vmatprep.subr.bf16.mxu0 0
    %376 = vmatpush1.bf16.msra.mxu0 0
    %377 = vmatprep.subr.bf16.mxu0 0
    %378 = vmatpush1.bf16.msra.mxu0 0
    %379 = vmatprep.subr.bf16.mxu0 0
    %380 = vmatpush1.bf16.msra.mxu0 0
    %381 = vmatprep.mubr.bf16.mxu0 0
    %382 = vmatmul.mubr.bf16.gmra.mrb[0].mxu0 %v348
    %v383 = vpop.f32.mrb[0].mxu0
    %v384 = vadd.f32 %v67, %v383
    %v385 = vpop.f32.mrb[0].mxu0
    %v386 = vpop.f32.mrb[0].mxu0
    %v387 = vadd.f32 %v67, %v386
    %v388 = vpop.f32.mrb[0].mxu0
    %389 = vdwg.mxu0
    %v390 = vmax.f32 %v384, 0.0
    %v391 = vmax.f32 %v387, 0.0
    %v392 = vpack.c.bf16 %v391, %v390
    %393 = vmatprep.subr.bf16.mxu0 0
    %394 = vmatpush1.bf16.msra.mxu0 %v201
    %395 = vmatprep.subr.bf16.mxu0 0
    %396 = vmatpush1.bf16.msra.mxu0 %v202
    %397 = vmatprep.subr.bf16.mxu0 0
    %398 = vmatpush1.bf16.msra.mxu0 %v203
    %399 = vmatprep.subr.bf16.mxu0 0
    %400 = vmatpush1.bf16.msra.mxu0 %v204
    %401 = vmatprep.subr.bf16.mxu0 0
    %402 = vmatpush1.bf16.msra.mxu0 %v205
    %403 = vmatprep.subr.bf16.mxu0 0
    %404 = vmatpush1.bf16.msra.mxu0 %v206
    %405 = vmatprep.subr.bf16.mxu0 0
    %406 = vmatpush1.bf16.msra.mxu0 %v207
    %407 = vmatprep.subr.bf16.mxu0 0
    %408 = vmatpush1.bf16.msra.mxu0 %v208
    %409 = vmatprep.subr.bf16.mxu0 0
    %410 = vmatpush1.bf16.msra.mxu0 0
    %411 = vmatprep.subr.bf16.mxu0 0
    %412 = vmatpush1.bf16.msra.mxu0 0
    %413 = vmatprep.subr.bf16.mxu0 0
    %414 = vmatpush1.bf16.msra.mxu0 0
    %415 = vmatprep.subr.bf16.mxu0 0
    %416 = vmatpush1.bf16.msra.mxu0 0
    %417 = vmatprep.subr.bf16.mxu0 0
    %418 = vmatpush1.bf16.msra.mxu0 0
    %419 = vmatprep.subr.bf16.mxu0 0
    %420 = vmatpush1.bf16.msra.mxu0 0
    %421 = vmatprep.subr.bf16.mxu0 0
    %422 = vmatpush1.bf16.msra.mxu0 0
    %423 = vmatprep.subr.bf16.mxu0 0
    %424 = vmatpush1.bf16.msra.mxu0 0
    %425 = vmatprep.mubr.bf16.mxu0 0
    %426 = vmatmul.mubr.bf16.gmra.mrb[0].mxu0 %v392
    %v427 = vpop.f32.mrb[0].mxu0
    %v428 = vadd.f32 %v74, %v427
    %v429 = vpop.f32.mrb[0].mxu0
    %v430 = vpop.f32.mrb[0].mxu0
    %v431 = vadd.f32 %v74, %v430
    %v432 = vpop.f32.mrb[0].mxu0
    %433 = vdwg.mxu0
    %v434 = vadd.f32 %v346, %v428
    %v435 = vadd.f32 %v347, %v431
    %v436 = vpack.c.bf16 %v435, %v434
    %437 = vmatprep.subr.bf16.mxu0 0
    %438 = vmatpush1.bf16.msra.mxu0 %v109
    %439 = vmatprep.subr.bf16.mxu0 0
    %440 = vmatpush1.bf16.msra.mxu0 %v110
    %441 = vmatprep.subr.bf16.mxu0 0
    %442 = vmatpush1.bf16.msra.mxu0 %v111
    %443 = vmatprep.subr.bf16.mxu0 0
    %444 = vmatpush1.bf16.msra.mxu0 %v112
    %445 = vmatprep.subr.bf16.mxu0 0
    %446 = vmatpush1.bf16.msra.mxu0 %v113
    %447 = vmatprep.subr.bf16.mxu0 0
    %448 = vmatpush1.bf16.msra.mxu0 %v114
    %449 = vmatprep.subr.bf16.mxu0 0
    %450 = vmatpush1.bf16.msra.mxu0 %v115
    %451 = vmatprep.subr.bf16.mxu0 0
    %452 = vmatpush1.bf16.msra.mxu0 %v116
    %453 = vmatprep.subr.bf16.mxu0 0
    %454 = vmatpush1.bf16.msra.mxu0 0
    %455 = vmatprep.subr.bf16.mxu0 0
    %456 = vmatpush1.bf16.msra.mxu0 0
    %457 = vmatprep.subr.bf16.mxu0 0
    %458 = vmatpush1.bf16.msra.mxu0 0
    %459 = vmatprep.subr.bf16.mxu0 0
    %460 = vmatpush1.bf16.msra.mxu0 0
    %461 = vmatprep.subr.bf16.mxu0 0
    %462 = vmatpush1.bf16.msra.mxu0 0
    %463 = vmatprep.subr.bf16.mxu0 0
    %464 = vmatpush1.bf16.msra.mxu0 0
    %465 = vmatprep.subr.bf16.mxu0 0
    %466 = vmatpush1.bf16.msra.mxu0 0
    %467 = vmatprep.subr.bf16.mxu0 0
    %468 = vmatpush1.bf16.msra.mxu0 0
    %469 = vmatprep.mubr.bf16.mxu0 0
    %470 = vmatmul.mubr.bf16.gmra.mrb[0].mxu0 %v436
    %v471 = vpop.f32.mrb[0].mxu0
    %v472 = vadd.f32 %v67, %v471
    %v473 = vpop.f32.mrb[0].mxu0
    %v474 = vpop.f32.mrb[0].mxu0
    %v475 = vadd.f32 %v67, %v474
    %v476 = vpop.f32.mrb[0].mxu0
    %477 = vdwg.mxu0
    %v478 = vmax.f32 %v472, 0.0
    %v479 = vmax.f32 %v475, 0.0
    %v480 = vpack.c.bf16 %v479, %v478
    %481 = vmatprep.subr.bf16.mxu0 0
    %482 = vmatpush1.bf16.msra.mxu0 %v201
    %483 = vmatprep.subr.bf16.mxu0 0
    %484 = vmatpush1.bf16.msra.mxu0 %v202
    %485 = vmatprep.subr.bf16.mxu0 0
    %486 = vmatpush1.bf16.msra.mxu0 %v203
    %487 = vmatprep.subr.bf16.mxu0 0
    %488 = vmatpush1.bf16.msra.mxu0 %v204
    %489 = vmatprep.subr.bf16.mxu0 0
    %490 = vmatpush1.bf16.msra.mxu0 %v205
    %491 = vmatprep.subr.bf16.mxu0 0
    %492 = vmatpush1.bf16.msra.mxu0 %v206
    %493 = vmatprep.subr.bf16.mxu0 0
    %494 = vmatpush1.bf16.msra.mxu0 %v207
    %495 = vmatprep.subr.bf16.mxu0 0
    %496 = vmatpush1.bf16.msra.mxu0 %v208
    %497 = vmatprep.subr.bf16.mxu0 0
    %498 = vmatpush1.bf16.msra.mxu0 0
    %499 = vmatprep.subr.bf16.mxu0 0
    %500 = vmatpush1.bf16.msra.mxu0 0
    %501 = vmatprep.subr.bf16.mxu0 0
    %502 = vmatpush1.bf16.msra.mxu0 0
    %503 = vmatprep.subr.bf16.mxu0 0
    %504 = vmatpush1.bf16.msra.mxu0 0
    %505 = vmatprep.subr.bf16.mxu0 0
    %506 = vmatpush1.bf16.msra.mxu0 0
    %507 = vmatprep.subr.bf16.mxu0 0
    %508 = vmatpush1.bf16.msra.mxu0 0
    %509 = vmatprep.subr.bf16.mxu0 0
    %510 = vmatpush1.bf16.msra.mxu0 0
    %511 = vmatprep.subr.bf16.mxu0 0
    %512 = vmatpush1.bf16.msra.mxu0 0
    %513 = vmatprep.mubr.bf16.mxu0 0
    %514 = vmatmul.mubr.bf16.gmra.mrb[0].mxu0 %v480
    %v515 = vpop.f32.mrb[0].mxu0
    %v516 = vadd.f32 %v74, %v515
    %v517 = vpop.f32.mrb[0].mxu0
    %v518 = vpop.f32.mrb[0].mxu0
    %v519 = vadd.f32 %v74, %v518
    %v520 = vpop.f32.mrb[0].mxu0
    %521 = vdwg.mxu0
    %v522 = vadd.f32 %v434, %v516
    %v523 = vadd.f32 %v435, %v519
    %v524 = vpack.c.bf16 %v523, %v522
    %525 = vmatprep.subr.bf16.mxu0 0
    %526 = vmatpush1.bf16.msra.mxu0 %v109
    %527 = vmatprep.subr.bf16.mxu0 0
    %528 = vmatpush1.bf16.msra.mxu0 %v110
    %529 = vmatprep.subr.bf16.mxu0 0
    %530 = vmatpush1.bf16.msra.mxu0 %v111
    %531 = vmatprep.subr.bf16.mxu0 0
    %532 = vmatpush1.bf16.msra.mxu0 %v112
    %533 = vmatprep.subr.bf16.mxu0 0
    %534 = vmatpush1.bf16.msra.mxu0 %v113
    %535 = vmatprep.subr.bf16.mxu0 0
    %536 = vmatpush1.bf16.msra.mxu0 %v114
    %537 = vmatprep.subr.bf16.mxu0 0
    %538 = vmatpush1.bf16.msra.mxu0 %v115
    %539 = vmatprep.subr.bf16.mxu0 0
    %540 = vmatpush1.bf16.msra.mxu0 %v116
    %541 = vmatprep.subr.bf16.mxu0 0
    %542 = vmatpush1.bf16.msra.mxu0 0
    %543 = vmatprep.subr.bf16.mxu0 0
    %544 = vmatpush1.bf16.msra.mxu0 0
    %545 = vmatprep.subr.bf16.mxu0 0
    %546 = vmatpush1.bf16.msra.mxu0 0
    %547 = vmatprep.subr.bf16.mxu0 0
    %548 = vmatpush1.bf16.msra.mxu0 0
    %549 = vmatprep.subr.bf16.mxu0 0
    %550 = vmatpush1.bf16.msra.mxu0 0
    %551 = vmatprep.subr.bf16.mxu0 0
    %552 = vmatpush1.bf16.msra.mxu0 0
    %553 = vmatprep.subr.bf16.mxu0 0
    %554 = vmatpush1.bf16.msra.mxu0 0
    %555 = vmatprep.subr.bf16.mxu0 0
    %556 = vmatpush1.bf16.msra.mxu0 0
    %557 = vmatprep.mubr.bf16.mxu0 0
    %558 = vmatmul.mubr.bf16.gmra.mrb[0].mxu0 %v524
    %v559 = vpop.f32.mrb[0].mxu0
    %v560 = vadd.f32 %v67, %v559
    %v561 = vpop.f32.mrb[0].mxu0
    %v562 = vpop.f32.mrb[0].mxu0
    %v563 = vadd.f32 %v67, %v562
    %v564 = vpop.f32.mrb[0].mxu0
    %565 = vdwg.mxu0
    %v566 = vmax.f32 %v560, 0.0
    %v567 = vmax.f32 %v563, 0.0
    %v568 = vpack.c.bf16 %v567, %v566
    %569 = vmatprep.subr.bf16.mxu0 0
    %570 = vmatpush1.bf16.msra.mxu0 %v201
    %571 = vmatprep.subr.bf16.mxu0 0
    %572 = vmatpush1.bf16.msra.mxu0 %v202
    %573 = vmatprep.subr.bf16.mxu0 0
    %574 = vmatpush1.bf16.msra.mxu0 %v203
    %575 = vmatprep.subr.bf16.mxu0 0
    %576 = vmatpush1.bf16.msra.mxu0 %v204
    %577 = vmatprep.subr.bf16.mxu0 0
    %578 = vmatpush1.bf16.msra.mxu0 %v205
    %579 = vmatprep.subr.bf16.mxu0 0
    %580 = vmatpush1.bf16.msra.mxu0 %v206
    %581 = vmatprep.subr.bf16.mxu0 0
    %582 = vmatpush1.bf16.msra.mxu0 %v207
    %583 = vmatprep.subr.bf16.mxu0 0
    %584 = vmatpush1.bf16.msra.mxu0 %v208
    %585 = vmatprep.subr.bf16.mxu0 0
    %586 = vmatpush1.bf16.msra.mxu0 0
    %587 = vmatprep.subr.bf16.mxu0 0
    %588 = vmatpush1.bf16.msra.mxu0 0
    %589 = vmatprep.subr.bf16.mxu0 0
    %590 = vmatpush1.bf16.msra.mxu0 0
    %591 = vmatprep.subr.bf16.mxu0 0
    %592 = vmatpush1.bf16.msra.mxu0 0
    %593 = vmatprep.subr.bf16.mxu0 0
    %594 = vmatpush1.bf16.msra.mxu0 0
    %595 = vmatprep.subr.bf16.mxu0 0
    %596 = vmatpush1.bf16.msra.mxu0 0
    %597 = vmatprep.subr.bf16.mxu0 0
    %598 = vmatpush1.bf16.msra.mxu0 0
    %599 = vmatprep.subr.bf16.mxu0 0
    %600 = vmatpush1.bf16.msra.mxu0 0
    %601 = vmatprep.mubr.bf16.mxu0 0
    %602 = vmatmul.mubr.bf16.gmra.mrb[0].mxu0 %v568
    %v603 = vpop.f32.mrb[0].mxu0
    %v604 = vadd.f32 %v74, %v603
    %v605 = vpop.f32.mrb[0].mxu0
    %v606 = vpop.f32.mrb[0].mxu0
    %v607 = vadd.f32 %v74, %v606
    %v608 = vpop.f32.mrb[0].mxu0
    %609 = vdwg.mxu0
    %v610 = vadd.f32 %v522, %v604
    %v611 = vadd.f32 %v523, %v607
    %v612 = vpack.c.bf16 %v611, %v610
    %613 = vmatprep.subr.bf16.mxu0 0
    %614 = vmatpush1.bf16.msra.mxu0 %v109
    %615 = vmatprep.subr.bf16.mxu0 0
    %616 = vmatpush1.bf16.msra.mxu0 %v110
    %617 = vmatprep.subr.bf16.mxu0 0
    %618 = vmatpush1.bf16.msra.mxu0 %v111
    %619 = vmatprep.subr.bf16.mxu0 0
    %620 = vmatpush1.bf16.msra.mxu0 %v112
    %621 = vmatprep.subr.bf16.mxu0 0
    %622 = vmatpush1.bf16.msra.mxu0 %v113
    %623 = vmatprep.subr.bf16.mxu0 0
    %624 = vmatpush1.bf16.msra.mxu0 %v114
    %625 = vmatprep.subr.bf16.mxu0 0
    %626 = vmatpush1.bf16.msra.mxu0 %v115
    %627 = vmatprep.subr.bf16.mxu0 0
    %628 = vmatpush1.bf16.msra.mxu0 %v116
    %629 = vmatprep.subr.bf16.mxu0 0
    %630 = vmatpush1.bf16.msra.mxu0 0
    %631 = vmatprep.subr.bf16.mxu0 0
    %632 = vmatpush1.bf16.msra.mxu0 0
    %633 = vmatprep.subr.bf16.mxu0 0
    %634 = vmatpush1.bf16.msra.mxu0 0
    %635 = vmatprep.subr.bf16.mxu0 0
    %636 = vmatpush1.bf16.msra.mxu0 0
    %637 = vmatprep.subr.bf16.mxu0 0
    %638 = vmatpush1.bf16.msra.mxu0 0
    %639 = vmatprep.subr.bf16.mxu0 0
    %640 = vmatpush1.bf16.msra.mxu0 0
    %641 = vmatprep.subr.bf16.mxu0 0
    %642 = vmatpush1.bf16.msra.mxu0 0
    %643 = vmatprep.subr.bf16.mxu0 0
    %644 = vmatpush1.bf16.msra.mxu0 0
    %645 = vmatprep.mubr.bf16.mxu0 0
    %646 = vmatmul.mubr.bf16.gmra.mrb[0].mxu0 %v612
    %v647 = vpop.f32.mrb[0].mxu0
    %v648 = vadd.f32 %v67, %v647
    %v649 = vpop.f32.mrb[0].mxu0
    %v650 = vpop.f32.mrb[0].mxu0
    %v651 = vadd.f32 %v67, %v650
    %v652 = vpop.f32.mrb[0].mxu0
    %653 = vdwg.mxu0
    %v654 = vmax.f32 %v648, 0.0
    %v655 = vmax.f32 %v651, 0.0
    %v656 = vpack.c.bf16 %v655, %v654
    %657 = vmatprep.subr.bf16.mxu0 0
    %658 = vmatpush1.bf16.msra.mxu0 %v201
    %659 = vmatprep.subr.bf16.mxu0 0
    %660 = vmatpush1.bf16.msra.mxu0 %v202
    %661 = vmatprep.subr.bf16.mxu0 0
    %662 = vmatpush1.bf16.msra.mxu0 %v203
    %663 = vmatprep.subr.bf16.mxu0 0
    %664 = vmatpush1.bf16.msra.mxu0 %v204
    %665 = vmatprep.subr.bf16.mxu0 0
    %666 = vmatpush1.bf16.msra.mxu0 %v205
    %667 = vmatprep.subr.bf16.mxu0 0
    %668 = vmatpush1.bf16.msra.mxu0 %v206
    %669 = vmatprep.subr.bf16.mxu0 0
    %670 = vmatpush1.bf16.msra.mxu0 %v207
    %671 = vmatprep.subr.bf16.mxu0 0
    %672 = vmatpush1.bf16.msra.mxu0 %v208
    %673 = vmatprep.subr.bf16.mxu0 0
    %674 = vmatpush1.bf16.msra.mxu0 0
    %675 = vmatprep.subr.bf16.mxu0 0
    %676 = vmatpush1.bf16.msra.mxu0 0
    %677 = vmatprep.subr.bf16.mxu0 0
    %678 = vmatpush1.bf16.msra.mxu0 0
    %679 = vmatprep.subr.bf16.mxu0 0
    %680 = vmatpush1.bf16.msra.mxu0 0
    %681 = vmatprep.subr.bf16.mxu0 0
    %682 = vmatpush1.bf16.msra.mxu0 0
    %683 = vmatprep.subr.bf16.mxu0 0
    %684 = vmatpush1.bf16.msra.mxu0 0
    %685 = vmatprep.subr.bf16.mxu0 0
    %686 = vmatpush1.bf16.msra.mxu0 0
    %687 = vmatprep.subr.bf16.mxu0 0
    %688 = vmatpush1.bf16.msra.mxu0 0
    %689 = vmatprep.mubr.bf16.mxu0 0
    %690 = vmatmul.mubr.bf16.gmra.mrb[0].mxu0 %v656
    %v691 = vpop.f32.mrb[0].mxu0
    %v692 = vadd.f32 %v74, %v691
    %v693 = vpop.f32.mrb[0].mxu0
    %v694 = vpop.f32.mrb[0].mxu0
    %v695 = vadd.f32 %v74, %v694
    %v696 = vpop.f32.mrb[0].mxu0
    %697 = vdwg.mxu0
    %v698 = vadd.f32 %v610, %v692
    %v699 = vadd.f32 %v611, %v695
    %v700 = vpack.c.bf16 %v699, %v698
    %701 = vmatprep.subr.bf16.mxu0 0
    %702 = vmatpush1.bf16.msra.mxu0 %v109
    %703 = vmatprep.subr.bf16.mxu0 0
    %704 = vmatpush1.bf16.msra.mxu0 %v110
    %705 = vmatprep.subr.bf16.mxu0 0
    %706 = vmatpush1.bf16.msra.mxu0 %v111
    %707 = vmatprep.subr.bf16.mxu0 0
    %708 = vmatpush1.bf16.msra.mxu0 %v112
    %709 = vmatprep.subr.bf16.mxu0 0
    %710 = vmatpush1.bf16.msra.mxu0 %v113
    %711 = vmatprep.subr.bf16.mxu0 0
    %712 = vmatpush1.bf16.msra.mxu0 %v114
    %713 = vmatprep.subr.bf16.mxu0 0
    %714 = vmatpush1.bf16.msra.mxu0 %v115
    %715 = vmatprep.subr.bf16.mxu0 0
    %716 = vmatpush1.bf16.msra.mxu0 %v116
    %717 = vmatprep.subr.bf16.mxu0 0
    %718 = vmatpush1.bf16.msra.mxu0 0
    %719 = vmatprep.subr.bf16.mxu0 0
    %720 = vmatpush1.bf16.msra.mxu0 0
    %721 = vmatprep.subr.bf16.mxu0 0
    %722 = vmatpush1.bf16.msra.mxu0 0
    %723 = vmatprep.subr.bf16.mxu0 0
    %724 = vmatpush1.bf16.msra.mxu0 0
    %725 = vmatprep.subr.bf16.mxu0 0
    %726 = vmatpush1.bf16.msra.mxu0 0
    %727 = vmatprep.subr.bf16.mxu0 0
    %728 = vmatpush1.bf16.msra.mxu0 0
    %729 = vmatprep.subr.bf16.mxu0 0
    %730 = vmatpush1.bf16.msra.mxu0 0
    %731 = vmatprep.subr.bf16.mxu0 0
    %732 = vmatpush1.bf16.msra.mxu0 0
    %733 = vmatprep.mubr.bf16.mxu0 0
    %734 = vmatmul.mubr.bf16.gmra.mrb[0].mxu0 %v700
    %v735 = vpop.f32.mrb[0].mxu0
    %v736 = vadd.f32 %v67, %v735
    %v737 = vpop.f32.mrb[0].mxu0
    %v738 = vpop.f32.mrb[0].mxu0
    %v739 = vadd.f32 %v67, %v738
    %v740 = vpop.f32.mrb[0].mxu0
    %741 = vdwg.mxu0
    %v742 = vmax.f32 %v736, 0.0
    %v743 = vmax.f32 %v739, 0.0
    %v744 = vpack.c.bf16 %v743, %v742
    %745 = vmatprep.subr.bf16.mxu0 0
    %746 = vmatpush1.bf16.msra.mxu0 %v201
    %747 = vmatprep.subr.bf16.mxu0 0
    %748 = vmatpush1.bf16.msra.mxu0 %v202
    %749 = vmatprep.subr.bf16.mxu0 0
    %750 = vmatpush1.bf16.msra.mxu0 %v203
    %751 = vmatprep.subr.bf16.mxu0 0
    %752 = vmatpush1.bf16.msra.mxu0 %v204
    %753 = vmatprep.subr.bf16.mxu0 0
    %754 = vmatpush1.bf16.msra.mxu0 %v205
    %755 = vmatprep.subr.bf16.mxu0 0
    %756 = vmatpush1.bf16.msra.mxu0 %v206
    %757 = vmatprep.subr.bf16.mxu0 0
    %758 = vmatpush1.bf16.msra.mxu0 %v207
    %759 = vmatprep.subr.bf16.mxu0 0
    %760 = vmatpush1.bf16.msra.mxu0 %v208
    %761 = vmatprep.subr.bf16.mxu0 0
    %762 = vmatpush1.bf16.msra.mxu0 0
    %763 = vmatprep.subr.bf16.mxu0 0
    %764 = vmatpush1.bf16.msra.mxu0 0
    %765 = vmatprep.subr.bf16.mxu0 0
    %766 = vmatpush1.bf16.msra.mxu0 0
    %767 = vmatprep.subr.bf16.mxu0 0
    %768 = vmatpush1.bf16.msra.mxu0 0
    %769 = vmatprep.subr.bf16.mxu0 0
    %770 = vmatpush1.bf16.msra.mxu0 0
    %771 = vmatprep.subr.bf16.mxu0 0
    %772 = vmatpush1.bf16.msra.mxu0 0
    %773 = vmatprep.subr.bf16.mxu0 0
    %774 = vmatpush1.bf16.msra.mxu0 0
    %775 = vmatprep.subr.bf16.mxu0 0
    %776 = vmatpush1.bf16.msra.mxu0 0
    %777 = vmatprep.mubr.bf16.mxu0 0
    %778 = vmatmul.mubr.bf16.gmra.mrb[0].mxu0 %v744
    %v779 = vpop.f32.mrb[0].mxu0
    %v780 = vadd.f32 %v74, %v779
    %v781 = vpop.f32.mrb[0].mxu0
    %v782 = vpop.f32.mrb[0].mxu0
    %v783 = vadd.f32 %v74, %v782
    %v784 = vpop.f32.mrb[0].mxu0
    %785 = vdwg.mxu0
    %v786 = vadd.f32 %v698, %v780
    %v787 = vadd.f32 %v699, %v783
    %v788 = vpack.c.bf16 %v787, %v786
    %789 = vmatprep.subr.bf16.mxu0 0
    %790 = vmatpush1.bf16.msra.mxu0 %v109
    %791 = vmatprep.subr.bf16.mxu0 0
    %792 = vmatpush1.bf16.msra.mxu0 %v110
    %793 = vmatprep.subr.bf16.mxu0 0
    %794 = vmatpush1.bf16.msra.mxu0 %v111
    %795 = vmatprep.subr.bf16.mxu0 0
    %796 = vmatpush1.bf16.msra.mxu0 %v112
    %797 = vmatprep.subr.bf16.mxu0 0
    %798 = vmatpush1.bf16.msra.mxu0 %v113
    %799 = vmatprep.subr.bf16.mxu0 0
    %800 = vmatpush1.bf16.msra.mxu0 %v114
    %801 = vmatprep.subr.bf16.mxu0 0
    %802 = vmatpush1.bf16.msra.mxu0 %v115
    %803 = vmatprep.subr.bf16.mxu0 0
    %804 = vmatpush1.bf16.msra.mxu0 %v116
    %805 = vmatprep.subr.bf16.mxu0 0
    %806 = vmatpush1.bf16.msra.mxu0 0
    %807 = vmatprep.subr.bf16.mxu0 0
    %808 = vmatpush1.bf16.msra.mxu0 0
    %809 = vmatprep.subr.bf16.mxu0 0
    %810 = vmatpush1.bf16.msra.mxu0 0
    %811 = vmatprep.subr.bf16.mxu0 0
    %812 = vmatpush1.bf16.msra.mxu0 0
    %813 = vmatprep.subr.bf16.mxu0 0
    %814 = vmatpush1.bf16.msra.mxu0 0
    %815 = vmatprep.subr.bf16.mxu0 0
    %816 = vmatpush1.bf16.msra.mxu0 0
    %817 = vmatprep.subr.bf16.mxu0 0
    %818 = vmatpush1.bf16.msra.mxu0 0
    %819 = vmatprep.subr.bf16.mxu0 0
    %820 = vmatpush1.bf16.msra.mxu0 0
    %821 = vmatprep.mubr.bf16.mxu0 0
    %822 = vmatmul.mubr.bf16.gmra.mrb[0].mxu0 %v788
    %v823 = vpop.f32.mrb[0].mxu0
    %v824 = vadd.f32 %v67, %v823
    %v825 = vpop.f32.mrb[0].mxu0
    %v826 = vpop.f32.mrb[0].mxu0
    %v827 = vadd.f32 %v67, %v826
    %v828 = vpop.f32.mrb[0].mxu0
    %829 = vdwg.mxu0
    %v830 = vmax.f32 %v824, 0.0
    %v831 = vmax.f32 %v827, 0.0
    %v832 = vpack.c.bf16 %v831, %v830
    %833 = vmatprep.subr.bf16.mxu0 0
    %834 = vmatpush1.bf16.msra.mxu0 %v201
    %835 = vmatprep.subr.bf16.mxu0 0
    %836 = vmatpush1.bf16.msra.mxu0 %v202
    %837 = vmatprep.subr.bf16.mxu0 0
    %838 = vmatpush1.bf16.msra.mxu0 %v203
    %839 = vmatprep.subr.bf16.mxu0 0
    %840 = vmatpush1.bf16.msra.mxu0 %v204
    %841 = vmatprep.subr.bf16.mxu0 0
    %842 = vmatpush1.bf16.msra.mxu0 %v205
    %843 = vmatprep.subr.bf16.mxu0 0
    %844 = vmatpush1.bf16.msra.mxu0 %v206
    %845 = vmatprep.subr.bf16.mxu0 0
    %846 = vmatpush1.bf16.msra.mxu0 %v207
    %847 = vmatprep.subr.bf16.mxu0 0
    %848 = vmatpush1.bf16.msra.mxu0 %v208
    %849 = vmatprep.subr.bf16.mxu0 0
    %850 = vmatpush1.bf16.msra.mxu0 0
    %851 = vmatprep.subr.bf16.mxu0 0
    %852 = vmatpush1.bf16.msra.mxu0 0
    %853 = vmatprep.subr.bf16.mxu0 0
    %854 = vmatpush1.bf16.msra.mxu0 0
    %855 = vmatprep.subr.bf16.mxu0 0
    %856 = vmatpush1.bf16.msra.mxu0 0
    %857 = vmatprep.subr.bf16.mxu0 0
    %858 = vmatpush1.bf16.msra.mxu0 0
    %859 = vmatprep.subr.bf16.mxu0 0
    %860 = vmatpush1.bf16.msra.mxu0 0
    %861 = vmatprep.subr.bf16.mxu0 0
    %862 = vmatpush1.bf16.msra.mxu0 0
    %863 = vmatprep.subr.bf16.mxu0 0
    %864 = vmatpush1.bf16.msra.mxu0 0
    %865 = vmatprep.mubr.bf16.mxu0 0
    %866 = vmatmul.mubr.bf16.gmra.mrb[0].mxu0 %v832
    %v867 = vpop.f32.mrb[0].mxu0
    %v868 = vadd.f32 %v74, %v867
    %v869 = vpop.f32.mrb[0].mxu0
    %v870 = vpop.f32.mrb[0].mxu0
    %v871 = vadd.f32 %v74, %v870
    %v872 = vpop.f32.mrb[0].mxu0
    %873 = vdwg.mxu0
    %v874 = vadd.f32 %v786, %v868
    %v875 = vadd.f32 %v787, %v871
    %v876 = vld [vmem:[%s5] sm:$0xf]
    %v877 = vld [vmem:[%s5 + $0x4] sm:$0xf]
    %v878 = vld [vmem:[%s5 + $0x8] sm:$0xf]
    %v879 = vld [vmem:[%s5 + $0xc] sm:$0xf]
    %v880 = vld [vmem:[%s5 + $0x10] sm:$0xf]
    %v881 = vld [vmem:[%s5 + $0x14] sm:$0xf]
    %v882 = vld [vmem:[%s5 + $0x18] sm:$0xf]
    %v883 = vld [vmem:[%s5 + $0x1c] sm:$0xf]
    %v884 = vld [vmem:[%s5 + $0x20] sm:$0xf]
    %v885 = vld [vmem:[%s5 + $0x24] sm:$0xf]
    %v886 = vld [vmem:[%s5 + $0x28] sm:$0xf]
    %v887 = vld [vmem:[%s5 + $0x2c] sm:$0xf]
    %v888 = vld [vmem:[%s5 + $0x30] sm:$0xf]
    %v889 = vld [vmem:[%s5 + $0x34] sm:$0xf]
    %v890 = vld [vmem:[%s5 + $0x38] sm:$0xf]
    %v891 = vld [vmem:[%s5 + $0x3c] sm:$0xf]
    %v892 = vld [vmem:[%s6] sm:$0x1]
    %v894 = vlaneseq
    %v895 = vshrl.u32 %v894, 7
    %v896 = vsub.s32 0, %v895
    %v897 = vrot.slane %v892, %v896
    %v899 = vpack.c.bf16 %v875, %v874
    %v916 = vunpack.c.l.b16 %v876
    %v917 = vunpack.c.l.b16 %v877
    %v918 = vunpack.c.l.b16 %v878
    %v919 = vunpack.c.l.b16 %v879
    %v920 = vunpack.c.l.b16 %v880
    %v921 = vunpack.c.l.b16 %v881
    %v922 = vunpack.c.l.b16 %v882
    %v923 = vunpack.c.l.b16 %v883
    %v924 = vunpack.c.l.b16 %v884
    %v925 = vunpack.c.l.b16 %v885
    %v926 = vunpack.c.l.b16 %v886
    %v927 = vunpack.c.l.b16 %v887
    %v928 = vunpack.c.l.b16 %v888
    %v929 = vunpack.c.l.b16 %v889
    %v930 = vunpack.c.l.b16 %v890
    %v931 = vunpack.c.l.b16 %v891
    %v932 = vpack.c.b16 %v917, %v916
    %v933 = vpack.c.b16 %v919, %v918
    %v934 = vpack.c.b16 %v921, %v920
    %v935 = vpack.c.b16 %v923, %v922
    %v936 = vpack.c.b16 %v925, %v924
    %v937 = vpack.c.b16 %v927, %v926
    %v938 = vpack.c.b16 %v929, %v928
    %v939 = vpack.c.b16 %v931, %v930
    %948 = vmatprep.subr.bf16.mxu0 0
    %949 = vmatpush1.bf16.msra.mxu0 %v932
    %950 = vmatprep.subr.bf16.mxu0 0
    %951 = vmatpush1.bf16.msra.mxu0 %v933
    %952 = vmatprep.subr.bf16.mxu0 0
    %953 = vmatpush1.bf16.msra.mxu0 %v934
    %954 = vmatprep.subr.bf16.mxu0 0
    %955 = vmatpush1.bf16.msra.mxu0 %v935
    %956 = vmatprep.subr.bf16.mxu0 0
    %957 = vmatpush1.bf16.msra.mxu0 %v936
    %958 = vmatprep.subr.bf16.mxu0 0
    %959 = vmatpush1.bf16.msra.mxu0 %v937
    %960 = vmatprep.subr.bf16.mxu0 0
    %961 = vmatpush1.bf16.msra.mxu0 %v938
    %962 = vmatprep.subr.bf16.mxu0 0
    %963 = vmatpush1.bf16.msra.mxu0 %v939
    %964 = vmatprep.subr.bf16.mxu0 0
    %965 = vmatpush1.bf16.msra.mxu0 0
    %966 = vmatprep.subr.bf16.mxu0 0
    %967 = vmatpush1.bf16.msra.mxu0 0
    %968 = vmatprep.subr.bf16.mxu0 0
    %969 = vmatpush1.bf16.msra.mxu0 0
    %970 = vmatprep.subr.bf16.mxu0 0
    %971 = vmatpush1.bf16.msra.mxu0 0
    %972 = vmatprep.subr.bf16.mxu0 0
    %973 = vmatpush1.bf16.msra.mxu0 0
    %974 = vmatprep.subr.bf16.mxu0 0
    %975 = vmatpush1.bf16.msra.mxu0 0
    %976 = vmatprep.subr.bf16.mxu0 0
    %977 = vmatpush1.bf16.msra.mxu0 0
    %978 = vmatprep.subr.bf16.mxu0 0
    %979 = vmatpush1.bf16.msra.mxu0 0
    %980 = vmatprep.mubr.bf16.mxu0 0
    %981 = vmatmul.mubr.bf16.gmra.mrb[0].mxu0 %v899
    %v982 = vpop.f32.mrb[0].mxu0
    %v983 = vadd.f32 %v897, %v982
    %v984 = vpop.f32.mrb[0].mxu0
    %v985 = vpop.f32.mrb[0].mxu0
    %v986 = vadd.f32 %v897, %v985
    %v987 = vpop.f32.mrb[0].mxu0
    %988 = vdwg.mxu0
    %989 = vst [vmem:[#allocation2] sm:$0xff] %v983
    %990 = vst [vmem:[#allocation2 + $0x8] sm:$0xff] %v986
    // Predicated region
    $region30: #{odenet_model_linear.1} parent=1 // pred_check
      _
    $region31: #{odenet_model_linear.1} parent=1 // pred_check_branch
      %992 = sbr.rel (0) target = $region33
    $region32: #{odenet_model_linear.1} parent=1 // pred_region
      %s994 = ssub.s32 256, 256
      %995 = vsyncadd [#allocation3], %s994
      %s996 = sshll.u32 [#allocation2], 4
      %s997 = int_to_ptr.vmem [resolvable:$true] %s996
      %1002 = dma.vmem_to_hbm [thread:$0]  %s997, 256, %s7, [#allocation3], 128, 128, 8
    $region33: #{odenet_model_linear.1} parent=1 // pred_fallthru
      _
    // Predicated region
    $region34: #{odenet_model_linear.1} parent=1 // pred_check
      _
    $region35: #{odenet_model_linear.1} parent=1 // pred_check_branch
      %1004 = sbr.rel (0) target = $region37
    $region36: #{odenet_model_linear.1} parent=1 // pred_region
      %1005 = dma.done [#allocation3], 256
    $region37: #{odenet_model_linear.1} parent=1 // pred_fallthru
      _
    %1006 = vsyncpa [#allocation3], 1

</llo_original>
